<compile_context>
chip_gen: v5e
topology: v5e:2x2
jax: 0.10.0
libtpu: 0.0.40
codegen_flags: <defaults>
</compile_context>

<pallas_src>
import numpy as np
import jax
import jax.numpy as jnp
from jax.experimental import pallas as pl
from jax.experimental.pallas import tpu as pltpu


def _make_pos_enc(seq_len: int, d_model: int) -> jnp.ndarray:
    """Deterministic sine/cosine positional-encoding table, shape (seq_len, d_model)."""
    position = np.arange(seq_len, dtype=np.float32)[:, None]                 # (S, 1)
    div_term = np.exp(np.arange(0, d_model, 2, dtype=np.float32)
                      * (-np.log(10000.0) / d_model))                        # (ceil(D/2),)
    pe = np.zeros((seq_len, d_model), dtype=np.float32)
    pe[:, 0::2] = np.sin(position * div_term)                                # ceil(D/2) cols
    pe[:, 1::2] = np.cos(position * div_term[: d_model // 2])                # floor(D/2) cols (odd-D safe)
    return jnp.asarray(pe)


def _pos_enc_kernel(x_ref, pe_ref, o_ref):
    # x_ref: (B, tF)   pe_ref: (1, tF)   o_ref: (B, tF)
    # Straight VPU add; (1, tF) broadcasts across the batch (sublane) axis.
    o_ref[...] = x_ref[...] + pe_ref[...]


def positional_encoding(x: jnp.ndarray, pos_enc: jnp.ndarray,
                        *, tile_bytes: int = 2 * 1024 * 1024) -> jnp.ndarray:
    """x: (B, S, D); pos_enc: (S_full, D) with S_full >= S. Returns x + pos_enc[:S]."""
    B, S, D = x.shape
    F = S * D
    pe = pos_enc[:S, :].astype(x.dtype)      # matches self.pos_enc[:, :x.shape[1], :]

    # Lane-dense 2D views (free reshapes: contiguous last dims).
    x2 = x.reshape(B, F)
    pe2 = pe.reshape(1, F)

    itemsize = np.dtype(x.dtype).itemsize
    # Flat tile: multiple of 128 lanes, ~tile_bytes per (B, tF) buffer.
    tF = (tile_bytes // max(1, B * itemsize)) // 128 * 128
    tF = max(tF, 128)
    if tF >= F:
        tF = F        # single full block; full extent always satisfies tiling rules

    grid = (pl.cdiv(F, tF),)

    out2 = pl.pallas_call(
        _pos_enc_kernel,
        out_shape=jax.ShapeDtypeStruct((B, F), x.dtype),
        grid_spec=pltpu.PrefetchScalarGridSpec(
            num_scalar_prefetch=0,
            grid=grid,
            in_specs=[
                pl.BlockSpec((B, tF), lambda f: (0, f)),   # x slab, lane-dense
                pl.BlockSpec((1, tF), lambda f: (0, f)),   # pe tile, fetched once per tile
            ],
            out_specs=pl.BlockSpec((B, tF), lambda f: (0, f)),
        ),
        compiler_params=pltpu.CompilerParams(
            dimension_semantics=("parallel",),   # shards across both v7x TCs even for B == 1
        ),
    )(x2, pe2)

    return out2.reshape(B, S, D)


if __name__ == "__main__":
    # Small shapes consistent with the module's forward: (batch, seq_len, d_model)
    batch, seq_len, d_model = 2, 8, 32

    key = jax.random.PRNGKey(0)
    x = jax.random.normal(key, (batch, seq_len, d_model), dtype=jnp.float32)
    pos_enc = _make_pos_enc(seq_len, d_model)

    out = jax.block_until_ready(positional_encoding(x, pos_enc))
    ref = x + pos_enc[None, :seq_len, :]
    assert out.shape == (batch, seq_len, d_model)
    assert jnp.allclose(out, ref, atol=1e-6, rtol=1e-6)

    # Exercise the multi-tile grid path at toy size (forces tF=128, 2 grid steps).
    out_tiled = jax.block_until_ready(positional_encoding(x, pos_enc, tile_bytes=1024))
    assert jnp.allclose(out_tiled, ref, atol=1e-6, rtol=1e-6)

    # Odd d_model (regression test for the pe-table construction fix).
    d_odd = 33
    x_odd = jax.random.normal(jax.random.PRNGKey(1), (batch, seq_len, d_odd), dtype=jnp.float32)
    pe_odd = _make_pos_enc(seq_len, d_odd)
    out_odd = jax.block_until_ready(positional_encoding(x_odd, pe_odd))
    assert jnp.allclose(out_odd, x_odd + pe_odd[None, :, :], atol=1e-6, rtol=1e-6)

    print("KERNEL_OK")
</pallas_src>

<mosaic_0001>
module attributes {stable_mosaic.version = 11 : i64} {
  func.func @_pos_enc_kernel(%arg0: i32, %arg1: memref<2x256xf32, #tpu.memory_space<vmem>>, %arg2: memref<1x256xf32, #tpu.memory_space<vmem>>, %arg3: memref<2x256xf32, #tpu.memory_space<vmem>>) attributes {dimension_semantics = [#tpu.dimension_semantics<parallel>], iteration_bounds = array<i64: 1>, scalar_prefetch = 0 : i64, scratch_operands = 0 : i64, tpu.core_type = #tpu.core_type<tc>, window_params = [{transform_indices = @transform_0, window_bounds = array<i64: 2, 256>}, {transform_indices = @transform_1, window_bounds = array<i64: 1, 256>}, {transform_indices = @transform_2, window_bounds = array<i64: 2, 256>}]} {
    %c0 = arith.constant 0 : index
    %c0_0 = arith.constant 0 : index
    %0 = vector.load %arg1[%c0, %c0_0] : memref<2x256xf32, #tpu.memory_space<vmem>>, vector<2x256xf32>
    %c0_1 = arith.constant 0 : index
    %c0_2 = arith.constant 0 : index
    %1 = vector.load %arg2[%c0_1, %c0_2] : memref<1x256xf32, #tpu.memory_space<vmem>>, vector<1x256xf32>
    %2 = vector.broadcast %1 : vector<1x256xf32> to vector<2x256xf32>
    %3 = arith.addf %0, %2 : vector<2x256xf32>
    %c0_3 = arith.constant 0 : index
    %c0_4 = arith.constant 0 : index
    %4 = vector.load %arg3[%c0_3, %c0_4] : memref<2x256xf32, #tpu.memory_space<vmem>>, vector<2x256xf32>
    tpu.vector_store %arg3[%c0_3, %c0_4], %3 {strides = array<i32>} : memref<2x256xf32, #tpu.memory_space<vmem>>, vector<2x256xf32>,
    return
  }
  func.func @transform_0(%arg0: i32) -> (i32, i32) {
    %c0_i32 = arith.constant 0 : i32
    %c0_i32_0 = arith.constant 0 : i32
    return %c0_i32, %arg0 : i32, i32
  }
  func.func @transform_1(%arg0: i32) -> (i32, i32) {
    %c0_i32 = arith.constant 0 : i32
    %c0_i32_0 = arith.constant 0 : i32
    return %c0_i32, %arg0 : i32, i32
  }
  func.func @transform_2(%arg0: i32) -> (i32, i32) {
    %c0_i32 = arith.constant 0 : i32
    %c0_i32_0 = arith.constant 0 : i32
    return %c0_i32, %arg0 : i32, i32
  }
}

</mosaic_0001>

<llo_original>
// kernel: tpu_custom_call.1
$region0: #{tpu_custom_call.1}
  #allocation0 [shape = 'u32[]', space=smem, size = 0x4, offset = 0x4, fixed_abs, tag = 'smem constant byte address 0x4 - core index']
  #allocation1 [shape = 'u32[72,128]{1,0:T(1,128)}', space=vmem, size = 0x9000, scoped, tag = 'internal scratch']
  %s0 = inlined_call_operand.hbm [shape: f32[2,256], index: 0, kind: input, shape index: {}]
  %s1 = inlined_call_operand.hbm [shape: f32[1,256], index: 1, kind: input, shape index: {}]
  %s2 = inlined_call_operand.hbm [shape: f32[2,256], index: 2, kind: output, shape index: {}]
  %s3 = sld [smem:[#allocation0]]
  $region26: #{tpu_custom_call.1} parent=0
    _
  %s5 = ssub.s32 1, %s3
  %s6 = scalar_select 0, %s5, %s3
  $region1: #{tpu_custom_call.1} parent=0
    #allocation2 [shape = 'u8[2048]{0}', space=vmem, size = 0x800, scoped, tag = 'input window, operand 0, single buffered']
    #allocation3 [shape = 's32[1]{0}', space=sflag, size = 0x4, scoped, tag = 'scoped memory for tpu_custom_call.1']
    #allocation4 [shape = 's32[1]{0}', space=sflag, size = 0x4, scoped, tag = 'scoped memory for tpu_custom_call.1']
    #allocation5 [shape = 'u8[1024]{0}', space=vmem, size = 0x400, scoped, tag = 'input window, operand 1, single buffered']
    #allocation6 [shape = 's32[1]{0}', space=sflag, size = 0x4, scoped, tag = 'scoped memory for tpu_custom_call.1']
    #allocation7 [shape = 'u8[2048]{0}', space=vmem, size = 0x800, scoped, tag = 'output window, operand 0, single buffered']
    %7 = vsyncpa [#allocation3], 0
    %8 = vsyncpa [#allocation6], 0
    %9 = vsyncpa [#allocation4], 0
    // Predicated region
    $region2: #{tpu_custom_call.1} parent=1 // pred_check
      _
    $region3: #{tpu_custom_call.1} parent=1 // pred_check_branch
      %11 = sbr.rel (0) target = $region5
    $region4: #{tpu_custom_call.1} parent=1 // pred_region
      %13 = vsyncadd [#allocation3], 0
      %s15 = sshll.u32 %s0, 4
      %s16 = int_to_ptr.hbm [resolvable:$true] %s15
      %s17 = sshll.u32 [#allocation2], 4
      %s18 = int_to_ptr.vmem [resolvable:$true] %s17
      %20 = dma.hbm_to_vmem [thread:$0]  %s16, 64, %s18, [#allocation3]
    $region5: #{tpu_custom_call.1} parent=1 // pred_fallthru
      _
    // Predicated region
    $region6: #{tpu_custom_call.1} parent=1 // pred_check
      _
    $region7: #{tpu_custom_call.1} parent=1 // pred_check_branch
      %22 = sbr.rel (0) target = $region9
    $region8: #{tpu_custom_call.1} parent=1 // pred_region
      %24 = vsyncadd [#allocation6], 0
      %s26 = sshll.u32 %s1, 4
      %s27 = int_to_ptr.hbm [resolvable:$true] %s26
      %s28 = sshll.u32 [#allocation5], 4
      %s29 = int_to_ptr.vmem [resolvable:$true] %s28
      %31 = dma.hbm_to_vmem [thread:$0]  %s27, 32, %s29, [#allocation6]
    $region9: #{tpu_custom_call.1} parent=1 // pred_fallthru
      _
    // Predicated region
    $region10: #{tpu_custom_call.1} parent=1 // pred_check
      _
    $region11: #{tpu_custom_call.1} parent=1 // pred_check_branch
      %33 = sbr.rel (0) target = $region13
    $region12: #{tpu_custom_call.1} parent=1 // pred_region
      %35 = dma.done [#allocation3], 64
    $region13: #{tpu_custom_call.1} parent=1 // pred_fallthru
      _
    // Predicated region
    $region14: #{tpu_custom_call.1} parent=1 // pred_check
      _
    $region15: #{tpu_custom_call.1} parent=1 // pred_check_branch
      %37 = sbr.rel (0) target = $region17
    $region16: #{tpu_custom_call.1} parent=1 // pred_region
      %39 = dma.done [#allocation6], 32
    $region17: #{tpu_custom_call.1} parent=1 // pred_fallthru
      _
    %v40 = vld [vmem:[#allocation2] sm:$0xf]
    %v41 = vld [vmem:[#allocation5] sm:$0x3]
    %v43 = vperm.slane %v41, 0
    %v44 = vperm.slane %v41, 1
    %v45 = vrot.slane %v44, 6
    %vm46 = vcmask 1041408
    %v47 = vsel %vm46, %v43, %v45
    %v49 = vadd.f32 %v40, %v47
    %50 = vst [vmem:[#allocation7] sm:$0xf] %v49
    // Predicated region
    $region18: #{tpu_custom_call.1} parent=1 // pred_check
      _
    $region19: #{tpu_custom_call.1} parent=1 // pred_check_branch
      %52 = sbr.rel (0) target = $region21
    $region20: #{tpu_custom_call.1} parent=1 // pred_region
      %54 = vsyncadd [#allocation4], 0
      %s56 = sshll.u32 [#allocation7], 4
      %s57 = int_to_ptr.vmem [resolvable:$true] %s56
      %s58 = sshll.u32 %s2, 4
      %s59 = int_to_ptr.hbm [resolvable:$true] %s58
      %61 = dma.vmem_to_hbm [thread:$0]  %s57, 64, %s59, [#allocation4]
    $region21: #{tpu_custom_call.1} parent=1 // pred_fallthru
      _
    // Predicated region
    $region22: #{tpu_custom_call.1} parent=1 // pred_check
      _
    $region23: #{tpu_custom_call.1} parent=1 // pred_check_branch
      %63 = sbr.rel (0) target = $region25
    $region24: #{tpu_custom_call.1} parent=1 // pred_region
      %65 = dma.done [#allocation4], 64
    $region25: #{tpu_custom_call.1} parent=1 // pred_fallthru
      _
    %66 = vsyncpa [#allocation3], 1
    %67 = vsyncpa [#allocation6], 1
    %68 = vsyncpa [#allocation4], 1

</llo_original>
